<compile_context>
chip_gen: v6e
topology: v6e:2x2x1
jax: 0.10.0
libtpu: 0.0.40
codegen_flags: <defaults>
</compile_context>

<pallas_src>
import functools

import jax
import jax.numpy as jnp
from jax.experimental import pallas as pl
from jax.experimental.pallas import tpu as pltpu


def _round_up(x, m):
    return (x + m - 1) // m * m


def _pick_tile_rows(n_rows, c_pad, per_buffer_bytes=1 << 20):
    """Largest multiple of 16 rows whose f32 logits tile fits the budget."""
    r = per_buffer_bytes // (c_pad * 4)
    r = (r // 16) * 16
    r = max(16, min(2048, r))
    # Don't pad tiny problems up to a huge single tile.
    r = min(r, _round_up(n_rows, 16))
    return max(16, r)


def _focal_loss_kernel(pred_ref, label_ref, out_ref, *, alpha, gamma):
    x = pred_ref[...].astype(jnp.float32)          # (tr, Cp) logits
    label = label_ref[...]                         # (tr, 1) int32, -1 == ignore

    # log-softmax pieces over the class (lane) dim.
    m = jnp.max(x, axis=-1, keepdims=True)                       # (tr, 1)
    s = x - m                                                    # (tr, Cp)
    lse = jnp.log(jnp.sum(jnp.exp(s), axis=-1, keepdims=True))   # (tr, 1)

    # Fused one-hot gather of the shifted logit at the label class.
    iota = jax.lax.broadcasted_iota(jnp.int32, x.shape, 1)
    onehot = (iota == label).astype(jnp.float32)                 # (tr, Cp)
    gathered = jnp.sum(s * onehot, axis=-1, keepdims=True)       # (tr, 1)

    mask = (label >= 0).astype(jnp.float32)                      # (tr, 1)
    # loss = -log_softmax(x)[label] * mask == (lse - s[label]) * mask; >= 0.
    loss = jnp.maximum((lse - gathered) * mask, 0.0)

    # Focal re-weighting: alpha * (1 - p)^gamma * CE  (gamma is a static int,
    # so ** lowers to integer_pow -> multiplies, not a float pow).
    p = jnp.exp(-loss)
    focal = alpha * (1.0 - p) ** gamma * loss

    fsum = jnp.sum(focal)
    msum = jnp.sum(mask)

    # Per-tile partial sums in a lane-dense (1, 8, 128) block:
    #   [0, 0, 0] = sum(focal), [0, 0, 1] = sum(mask), rest zero.
    lane = jax.lax.broadcasted_iota(jnp.int32, out_ref.shape, 2)
    vals = jnp.where(lane == 1, msum, jnp.zeros(out_ref.shape, jnp.float32))
    vals = jnp.where(lane == 0, fsum, vals)
    out_ref[...] = vals


def focal_loss(prediction, ground_truth, length, *, alpha=0.99, gamma=2,
               tile_rows=None):
    """prediction: (B, T, C) float logits; ground_truth: (B, >=T, C) one-hot;
    length: (B,) int.  Returns scalar float32 loss (use_focal/size_average)."""
    B, T, C = prediction.shape
    ground_truth = ground_truth[:, :T, :]

    # Integer labels + length mask folded together (label = -1 -> ignored).
    labels = jnp.argmax(ground_truth, axis=2).astype(jnp.int32)          # (B, T)
    valid = (jnp.arange(T, dtype=jnp.int32)[None, :]
             < length[:, None].astype(jnp.int32))                        # (B, T)
    labels = jnp.where(valid, labels, -1)

    N = B * T
    C_pad = _round_up(C, 128)
    pred2d = prediction.reshape(N, C)
    if C_pad != C:
        # Large-negative padding keeps log-softmax exact and lanes dense.
        pred2d = jnp.pad(pred2d, ((0, 0), (0, C_pad - C)),
                         constant_values=-1e30)

    if tile_rows is None:
        tile_rows = _pick_tile_rows(N, C_pad)
    assert tile_rows % 16 == 0, "tile_rows must be a multiple of 16"

    N_pad = _round_up(N, tile_rows)
    labels2d = labels.reshape(N, 1)
    if N_pad != N:
        pred2d = jnp.pad(pred2d, ((0, N_pad - N), (0, 0)))
        labels2d = jnp.pad(labels2d, ((0, N_pad - N), (0, 0)),
                           constant_values=-1)
    num_tiles = N_pad // tile_rows

    kernel = functools.partial(
        _focal_loss_kernel, alpha=float(alpha),
        gamma=int(gamma) if float(gamma).is_integer() else float(gamma))

    partials = pl.pallas_call(
        kernel,
        out_shape=jax.ShapeDtypeStruct((num_tiles, 8, 128), jnp.float32),
        grid=(num_tiles,),
        in_specs=[
            pl.BlockSpec((tile_rows, C_pad), lambda i: (i, 0)),
            pl.BlockSpec((tile_rows, 1), lambda i: (i, 0)),
        ],
        out_specs=pl.BlockSpec((1, 8, 128), lambda i: (i, 0, 0)),
        compiler_params=pltpu.CompilerParams(
            dimension_semantics=("parallel",)),
    )(pred2d, labels2d)

    focal_sum = jnp.sum(partials[:, 0, 0])
    mask_sum = jnp.sum(partials[:, 0, 1])
    return focal_sum / mask_sum


def _focal_loss_ref(prediction, ground_truth, length, *, alpha=0.99, gamma=2):
    B, T, C = prediction.shape
    ground_truth = ground_truth[:, :T, :]
    mask = (jnp.arange(T)[None, :] < length[:, None]).astype(prediction.dtype)
    pred2d = prediction.reshape(B * T, C)
    logp = jax.nn.log_softmax(pred2d, axis=1)
    idx = jnp.argmax(ground_truth.reshape(B * T, C), axis=1)
    gathered = jnp.take_along_axis(logp, idx[:, None], axis=1)
    mask2d = mask.reshape(B * T, 1)
    loss = -gathered * mask2d
    p = jnp.exp(-loss)
    loss = alpha * (1.0 - p) ** gamma * loss
    return jnp.sum(loss) / jnp.sum(mask2d)


if __name__ == "__main__":
    key = jax.random.PRNGKey(0)
    k1, k2, k3, k4 = jax.random.split(key, 4)

    # Test 1: small shapes consistent with the module (single tile).
    B, T, C = 2, 8, 32
    prediction = jax.random.normal(k1, (B, T, C), dtype=jnp.float32)
    labels = jax.random.randint(k2, (B, T), 1, C)
    ground_truth = jax.nn.one_hot(labels, C, dtype=jnp.float32)
    length = jnp.array([T, T - 3], dtype=jnp.int32)

    out = jax.block_until_ready(focal_loss(prediction, ground_truth, length))
    ref = _focal_loss_ref(prediction, ground_truth, length)
    assert jnp.allclose(out, ref, rtol=1e-5, atol=1e-6), (out, ref)

    # Test 2: non-128 class count + multiple grid tiles (partial-sum path).
    B2, T2, C2 = 4, 8, 40
    pred2 = jax.random.normal(k3, (B2, T2, C2), dtype=jnp.float32)
    labels2 = jax.random.randint(k4, (B2, T2), 1, C2)
    gt2 = jax.nn.one_hot(labels2, C2, dtype=jnp.float32)
    length2 = jnp.array([8, 5, 7, 2], dtype=jnp.int32)

    out2 = jax.block_until_ready(
        focal_loss(pred2, gt2, length2, tile_rows=16))
    ref2 = _focal_loss_ref(pred2, gt2, length2)
    assert jnp.allclose(out2, ref2, rtol=1e-5, atol=1e-6), (out2, ref2)

    print("KERNEL_OK")
</pallas_src>

<mosaic_0001>
module attributes {stable_mosaic.version = 11 : i64} {
  func.func @_focal_loss_kernel(%arg0: i32, %arg1: memref<16x128xf32, #tpu.memory_space<vmem>>, %arg2: memref<16x1xi32, #tpu.memory_space<vmem>>, %arg3: memref<1x8x128xf32, #tpu.memory_space<vmem>>) attributes {dimension_semantics = [#tpu.dimension_semantics<parallel>], iteration_bounds = array<i64: 1>, scalar_prefetch = 0 : i64, scratch_operands = 0 : i64, tpu.core_type = #tpu.core_type<tc>, window_params = [{transform_indices = @transform_0, window_bounds = array<i64: 16, 128>}, {transform_indices = @transform_1, window_bounds = array<i64: 16, 1>}, {transform_indices = @transform_2, window_bounds = array<i64: 1, 8, 128>}]} {
    %c0 = arith.constant 0 : index
    %c0_0 = arith.constant 0 : index
    %0 = vector.load %arg1[%c0, %c0_0] : memref<16x128xf32, #tpu.memory_space<vmem>>, vector<16x128xf32>
    %c0_1 = arith.constant 0 : index
    %c0_2 = arith.constant 0 : index
    %1 = vector.load %arg2[%c0_1, %c0_2] : memref<16x1xi32, #tpu.memory_space<vmem>>, vector<16x1xi32>
    %cst = arith.constant dense<0xFF800000> : vector<16xf32>
    %2 = vector.multi_reduction <maximumf>, %0, %cst [1] : vector<16x128xf32> to vector<16xf32>
    %3 = vector.shape_cast %2 : vector<16xf32> to vector<16x1xf32>
    %4 = vector.broadcast %3 : vector<16x1xf32> to vector<16x128xf32>
    %5 = arith.subf %0, %4 : vector<16x128xf32>
    %6 = math.exp %5 : vector<16x128xf32>
    %cst_3 = arith.constant dense<0.000000e+00> : vector<16xf32>
    %7 = vector.multi_reduction <add>, %6, %cst_3 [1] : vector<16x128xf32> to vector<16xf32>
    %8 = vector.shape_cast %7 : vector<16xf32> to vector<16x1xf32>
    %9 = math.log %8 : vector<16x1xf32>
    %10 = tpu.iota {dimensions = array<i32: 1>} : vector<16x128xi32>
    %11 = vector.broadcast %1 : vector<16x1xi32> to vector<16x128xi32>
    %12 = arith.cmpi eq, %10, %11 : vector<16x128xi32>
    %13 = arith.extui %12 : vector<16x128xi1> to vector<16x128xi32>
    %14 = arith.sitofp %13 : vector<16x128xi32> to vector<16x128xf32>
    %15 = arith.mulf %5, %14 : vector<16x128xf32>
    %cst_4 = arith.constant dense<0.000000e+00> : vector<16xf32>
    %16 = vector.multi_reduction <add>, %15, %cst_4 [1] : vector<16x128xf32> to vector<16xf32>
    %17 = vector.shape_cast %16 : vector<16xf32> to vector<16x1xf32>
    %c0_i32 = arith.constant 0 : i32
    %18 = vector.broadcast %c0_i32 : i32 to vector<16x1xi32>
    %19 = arith.cmpi sge, %1, %18 : vector<16x1xi32>
    %20 = arith.extui %19 : vector<16x1xi1> to vector<16x1xi32>
    %21 = arith.sitofp %20 : vector<16x1xi32> to vector<16x1xf32>
    %22 = arith.subf %9, %17 : vector<16x1xf32>
    %23 = arith.mulf %22, %21 : vector<16x1xf32>
    %cst_5 = arith.constant 0.000000e+00 : f32
    %24 = vector.broadcast %cst_5 : f32 to vector<16x1xf32>
    %25 = arith.maximumf %23, %24 : vector<16x1xf32>
    %cst_6 = arith.constant 0.000000e+00 : f32
    %26 = vector.broadcast %cst_6 : f32 to vector<16x1xf32>
    %27 = arith.subf %26, %25 : vector<16x1xf32>
    %28 = math.exp %27 : vector<16x1xf32>
    %cst_7 = arith.constant 1.000000e+00 : f32
    %29 = vector.broadcast %cst_7 : f32 to vector<16x1xf32>
    %30 = arith.subf %29, %28 : vector<16x1xf32>
    %31 = arith.mulf %30, %30 : vector<16x1xf32>
    %cst_8 = arith.constant 9.900000e-01 : f32
    %32 = vector.broadcast %cst_8 : f32 to vector<16x1xf32>
    %33 = arith.mulf %32, %31 : vector<16x1xf32>
    %34 = arith.mulf %33, %25 : vector<16x1xf32>
    %35 = vector.shape_cast %34 : vector<16x1xf32> to vector<1x16x1xf32>
    %cst_9 = arith.constant dense<0.000000e+00> : vector<1xf32>
    %36 = vector.multi_reduction <add>, %35, %cst_9 [1, 2] : vector<1x16x1xf32> to vector<1xf32>
    %37 = vector.shape_cast %36 : vector<1xf32> to vector<1x1x1xf32>
    %38 = vector.extract %37[0, 0, 0] : f32 from vector<1x1x1xf32>
    %39 = vector.shape_cast %21 : vector<16x1xf32> to vector<1x16x1xf32>
    %cst_10 = arith.constant dense<0.000000e+00> : vector<1xf32>
    %40 = vector.multi_reduction <add>, %39, %cst_10 [1, 2] : vector<1x16x1xf32> to vector<1xf32>
    %41 = vector.shape_cast %40 : vector<1xf32> to vector<1x1x1xf32>
    %42 = vector.extract %41[0, 0, 0] : f32 from vector<1x1x1xf32>
    %43 = tpu.iota {dimensions = array<i32: 2>} : vector<1x8x128xi32>
    %c1_i32 = arith.constant 1 : i32
    %44 = vector.broadcast %c1_i32 : i32 to vector<1x8x128xi32>
    %45 = arith.cmpi eq, %43, %44 : vector<1x8x128xi32>
    %cst_11 = arith.constant 0.000000e+00 : f32
    %46 = vector.broadcast %cst_11 : f32 to vector<1x8x128xf32>
    %47 = vector.broadcast %42 : f32 to vector<1x8x128xf32>
    %48 = arith.select %45, %47, %46 : vector<1x8x128xi1>, vector<1x8x128xf32>
    %c0_i32_12 = arith.constant 0 : i32
    %49 = vector.broadcast %c0_i32_12 : i32 to vector<1x8x128xi32>
    %50 = arith.cmpi eq, %43, %49 : vector<1x8x128xi32>
    %51 = vector.broadcast %38 : f32 to vector<1x8x128xf32>
    %52 = arith.select %50, %51, %48 : vector<1x8x128xi1>, vector<1x8x128xf32>
    %c0_13 = arith.constant 0 : index
    %c0_14 = arith.constant 0 : index
    %c0_15 = arith.constant 0 : index
    %53 = vector.load %arg3[%c0_13, %c0_14, %c0_15] : memref<1x8x128xf32, #tpu.memory_space<vmem>>, vector<1x8x128xf32>
    tpu.vector_store %arg3[%c0_13, %c0_14, %c0_15], %52 {strides = array<i32>} : memref<1x8x128xf32, #tpu.memory_space<vmem>>, vector<1x8x128xf32>,
    return
  }
  func.func @transform_0(%arg0: i32) -> (i32, i32) {
    %c0_i32 = arith.constant 0 : i32
    %c0_i32_0 = arith.constant 0 : i32
    return %arg0, %c0_i32 : i32, i32
  }
  func.func @transform_1(%arg0: i32) -> (i32, i32) {
    %c0_i32 = arith.constant 0 : i32
    %c0_i32_0 = arith.constant 0 : i32
    return %arg0, %c0_i32 : i32, i32
  }
  func.func @transform_2(%arg0: i32) -> (i32, i32, i32) {
    %c0_i32 = arith.constant 0 : i32
    %c0_i32_0 = arith.constant 0 : i32
    %c0_i32_1 = arith.constant 0 : i32
    return %arg0, %c0_i32, %c0_i32_0 : i32, i32, i32
  }
}

</mosaic_0001>

<llo_original>
// kernel: tpu_custom_call.1
$region0: #{tpu_custom_call.1}
  #allocation0 [shape = 'u32[]', space=smem, size = 0x4, offset = 0x4, fixed_abs, tag = 'smem constant byte address 0x4 - core index']
  #allocation1 [shape = 'u32[144,128]{1,0:T(1,128)}', space=vmem, size = 0x12000, scoped, tag = 'internal scratch']
  %s0 = inlined_call_operand.vmem [shape: f32[16,128], index: 0, kind: input, shape index: {}]
  %s1 = inlined_call_operand.vmem [shape: s32[16,1], index: 1, kind: input, shape index: {}]
  %s2 = inlined_call_operand.hbm [shape: f32[1,8,128], index: 2, kind: output, shape index: {}]
  %s3 = sld [smem:[#allocation0]]
  $region18: #{tpu_custom_call.1} parent=0
    _
  %s5 = ssub.s32 1, %s3
  %s6 = scalar_select 0, %s5, %s3
  $region1: #{tpu_custom_call.1} parent=0
    #allocation2 [shape = 'u8[4096]{0}', space=vmem, size = 0x1000, scoped, tag = 'output window, operand 0, single buffered']
    #allocation3 [shape = 's32[1]{0}', space=sflag, size = 0x4, scoped, tag = 'scoped memory for tpu_custom_call.1']
    %7 = vsyncpa [#allocation3], 0
    // Predicated region
    $region2: #{tpu_custom_call.1} parent=1 // pred_check
      _
    $region3: #{tpu_custom_call.1} parent=1 // pred_check_branch
      %9 = sbr.rel (0) target = $region5
    $region4: #{tpu_custom_call.1} parent=1 // pred_region
      _
    $region5: #{tpu_custom_call.1} parent=1 // pred_fallthru
      _
    // Predicated region
    $region6: #{tpu_custom_call.1} parent=1 // pred_check
      _
    $region7: #{tpu_custom_call.1} parent=1 // pred_check_branch
      %11 = sbr.rel (0) target = $region9
    $region8: #{tpu_custom_call.1} parent=1 // pred_region
      _
    $region9: #{tpu_custom_call.1} parent=1 // pred_fallthru
      _
    %v12 = vld [vmem:[%s0] sm:$0xff]
    %v13 = vld [vmem:[%s0 + $0x8] sm:$0xff]
    %v14 = vld [vmem:[%s1] sm:$0xff]
    %v15 = vld [vmem:[%s1 + $0x8] sm:$0xff]
    %16 = vmax.xlane.f32.xlu0 %v12
    %v17 = vpop.xlane.xlu0 %16
    %18 = vmax.xlane.f32.xlu0 %v13
    %v19 = vpop.xlane.xlu0 %18
    %v20 = vsub.f32 %v12, %v17
    %v21 = vsub.f32 %v13, %v19
    %v22 = vmul.f32 %v20, 1.442695
    %v23 = vpow.pop %v22
    %v24 = vmul.f32 %v21, 1.442695
    %v25 = vpow.pop %v24
    %26 = vadd.xlane.f32.xlu0 %v23
    %v27 = vpop.xlane.xlu0 %26
    %28 = vadd.xlane.f32.xlu0 %v25
    %v29 = vpop.xlane.xlu0 %28
    %v30 = vlog2.pop %v27
    %v31 = vmul.f32 %v30, 0.6931472
    %v32 = vlog2.pop %v29
    %v33 = vmul.f32 %v32, 0.6931472
    %v34 = vlaneseq
    %v35 = vand.u32 %v34, 127
    %36 = vset.pattern.permute.xlu0 0
    %37 = vperm.xlu0 %36, %v14
    %v38 = vpop.permute.xlu0 %37
    %39 = vset.pattern.permute.xlu0 0
    %40 = vperm.xlu0 %39, %v15
    %v41 = vpop.permute.xlu0 %40
    %vm42 = vcmp.eq.s32.totalorder %v35, %v38
    %vm43 = vcmp.eq.s32.totalorder %v35, %v41
    %v44 = vsel %vm42, 1, 0
    %v45 = vsel %vm43, 1, 0
    %v46 = vcvt.s32.f32 %v44
    %v47 = vcvt.s32.f32 %v45
    %v48 = vmul.f32 %v20, %v46
    %v49 = vmul.f32 %v21, %v47
    %50 = vadd.xlane.f32.xlu0 %v48
    %v51 = vpop.xlane.xlu0 %50
    %52 = vadd.xlane.f32.xlu0 %v49
    %v53 = vpop.xlane.xlu0 %52
    %vm54 = vcmp.ge.s32.totalorder %v14, 0
    %vm55 = vcmp.ge.s32.totalorder %v15, 0
    %v56 = vsel %vm54, 1, 0
    %v57 = vsel %vm55, 1, 0
    %v58 = vcvt.s32.f32 %v56
    %v59 = vcvt.s32.f32 %v57
    %v60 = vsub.f32 %v31, %v51
    %v61 = vsub.f32 %v33, %v53
    %v62 = vmul.f32 %v60, %v58
    %v63 = vmul.f32 %v61, %v59
    %v64 = vmax.f32 %v62, 0.0
    %v65 = vmax.f32 %v63, 0.0
    %v66 = vsub.f32 0.0, %v64
    %v67 = vsub.f32 0.0, %v65
    %v68 = vmul.f32 %v66, 1.442695
    %v69 = vpow.pop %v68
    %v70 = vmul.f32 %v67, 1.442695
    %v71 = vpow.pop %v70
    %v72 = vsub.f32 1.0, %v69
    %v73 = vsub.f32 1.0, %v71
    %v74 = vmul.f32 %v72, %v72
    %v75 = vmul.f32 %v73, %v73
    %v76 = vmul.f32 %v74, 0.99
    %v77 = vmul.f32 %v75, 0.99
    %v78 = vmul.f32 %v76, %v64
    %v79 = vmul.f32 %v77, %v65
    %vm80 = vcmask 7168
    %v81 = vsel %vm80, %v78, 0.0
    %v82 = vsel %vm80, %v79, 0.0
    %v83 = vadd.f32 %v81, %v82
    %84 = vadd.xlane.f32.xlu0 %v83
    %v85 = vpop.xlane.xlu0 %84
    %v86 = vrot.slane %v85, 4
    %v87 = vadd.f32 %v85, %v86
    %v88 = vrot.slane %v87, 2
    %v89 = vadd.f32 %v87, %v88
    %v90 = vrot.slane %v89, 1
    %v91 = vadd.f32 %v89, %v90
    %s92 = vtos %v91
    %v93 = vsel %vm80, %v58, 0.0
    %v94 = vsel %vm80, %v59, 0.0
    %v95 = vadd.f32 %v93, %v94
    %96 = vadd.xlane.f32.xlu0 %v95
    %v97 = vpop.xlane.xlu0 %96
    %v98 = vrot.slane %v97, 4
    %v99 = vadd.f32 %v97, %v98
    %v100 = vrot.slane %v99, 2
    %v101 = vadd.f32 %v99, %v100
    %v102 = vrot.slane %v101, 1
    %v103 = vadd.f32 %v101, %v102
    %s104 = vtos %v103
    %vm105 = vcmp.eq.s32.totalorder %v35, 1
    %v106 = vstv %s104
    %v107 = vsel %vm105, %v106, 0.0
    %vm108 = vcmp.eq.s32.totalorder %v35, 0
    %v109 = vstv %s92
    %v110 = vsel %vm108, %v109, %v107
    %111 = vst [vmem:[#allocation2] sm:$0xff] %v110
    // Predicated region
    $region10: #{tpu_custom_call.1} parent=1 // pred_check
      _
    $region11: #{tpu_custom_call.1} parent=1 // pred_check_branch
      %113 = sbr.rel (0) target = $region13
    $region12: #{tpu_custom_call.1} parent=1 // pred_region
      %s115 = ssub.s32 128, 128
      %116 = vsyncadd [#allocation3], %s115
      %s118 = sshll.u32 [#allocation2], 4
      %s119 = int_to_ptr.vmem [resolvable:$true] %s118
      %121 = dma.vmem_to_hbm [thread:$0]  %s119, 128, %s2, [#allocation3]
    $region13: #{tpu_custom_call.1} parent=1 // pred_fallthru
      _
    // Predicated region
    $region14: #{tpu_custom_call.1} parent=1 // pred_check
      _
    $region15: #{tpu_custom_call.1} parent=1 // pred_check_branch
      %123 = sbr.rel (0) target = $region17
    $region16: #{tpu_custom_call.1} parent=1 // pred_region
      %124 = dma.done [#allocation3], 128
    $region17: #{tpu_custom_call.1} parent=1 // pred_fallthru
      _
    %125 = vsyncpa [#allocation3], 1

</llo_original>
